<compile_context>
chip_gen: v7x
topology: tpu7x:2x2x1
jax: 0.10.0
libtpu: 0.0.40
codegen_flags: <defaults>
</compile_context>

<pallas_src>
import numpy as np
import jax
import jax.numpy as jnp
from jax import lax
from jax.experimental import pallas as pl
from jax.experimental.pallas import tpu as pltpu

FILTER_WIDTH = 13   # filter_width in OneGaussianFilter.__init__
NSIG = 10.0         # nsig

_PLANE_BLOCK_BYTES = 2 * 1024 * 1024   # per-block f32 budget (safe on v5e/v6e/v7x)
_MAX_PLANES_PER_STEP = 8               # bound on the static vertical-pass unroll
_TARGET_GRID_STEPS = 4                 # enough steps for DMA/compute overlap
_VMEM_LIMIT_BYTES = 32 * 1024 * 1024   # explicit scoped-VMEM ceiling


def _gaussian_kernel_1d(ksize: int, sigma: float) -> np.ndarray:
    # Deterministic replica of cv2.getGaussianKernel(ksize, sigma) for sigma > 0.
    x = np.arange(ksize, dtype=np.float64) - (ksize - 1) / 2.0
    k = np.exp(-(x ** 2) / (2.0 * sigma ** 2))
    return k / k.sum()


def _blur_matrix(n: int, k1: np.ndarray, pad: int) -> np.ndarray:
    """Banded Toeplitz M (n, n) with zero 'same' padding folded in, so that
    (M @ v)[i] = sum_d k1[d] * v[i + d - pad] (out-of-range taps contribute 0)."""
    K = k1.shape[0]
    m = np.zeros((n, n), dtype=np.float64)
    for i in range(n):
        for d in range(K):
            r = i + d - pad
            if 0 <= r < n:
                m[i, r] += k1[d]
    return m.astype(np.float32)


def _one_gaussian_filter_kernel(a_ref, b_ref, x_ref, o_ref):
    """Processes Bp (image, channel) planes per grid step.

    a_ref: VMEM (Hp, Hp)      vertical-blur Toeplitz (left multiply)
    b_ref: VMEM (Wp, Wp)      horizontal-blur Toeplitz, pre-transposed (right multiply)
    x_ref: VMEM (Bp, Hp, Wp)  input planes
    o_ref: VMEM (Bp, Hp, Wp)  output planes
    """
    bp, hp, wp = x_ref.shape
    a = a_ref[...]
    bmat = b_ref[...]
    x = x_ref[...]

    # Horizontal pass: ONE batched MXU matmul with B stationary.
    xf = x.reshape(bp * hp, wp)                        # free view (hp % 8 == 0)
    t = jnp.dot(xf, bmat,
                precision=lax.Precision.HIGHEST,
                preferred_element_type=jnp.float32).reshape(bp, hp, wp)

    # Vertical pass + residual: short per-plane loop (bp <= 8).
    for p in range(bp):
        blur = jnp.dot(a, t[p],
                       precision=lax.Precision.HIGHEST,
                       preferred_element_type=jnp.float32)
        # res = 4 * (x - gaussian(x)), clamped to [-1, 1] (the ones/minus_ones buffers).
        res = jnp.clip(4.0 * (x[p] - blur), -1.0, 1.0)
        o_ref[p] = res.astype(o_ref.dtype)


def _planes_per_step(num_planes: int, plane_bytes: int) -> int:
    """Pick Bp | num_planes preferring >=4 (and even) grid steps, then larger Bp."""
    best_bp, best_key = 1, None
    for bp in range(1, num_planes + 1):
        if num_planes % bp != 0 or bp > _MAX_PLANES_PER_STEP:
            continue
        if bp > 1 and bp * plane_bytes > _PLANE_BLOCK_BYTES:
            continue
        steps = num_planes // bp
        key = (min(steps, _TARGET_GRID_STEPS), steps % 2 == 0, bp)
        if best_key is None or key > best_key:
            best_bp, best_key = bp, key
    return best_bp


def _round_up(x: int, m: int) -> int:
    return ((x + m - 1) // m) * m


def one_gaussian_filter(x: jax.Array) -> jax.Array:
    """Pallas implementation of OneGaussianFilter.forward. x: (N, 3, H, W)."""
    N, C, H, W = x.shape
    assert C == 3, "module concatenates exactly 3 channels"
    K = FILTER_WIDTH
    pad = K // 2  # int(13 / 2) == 6  -> "same" output size

    # Lane/sublane-dense padded sizes; the Toeplitz matrices are built at the
    # padded sizes, so the extra rows/cols read zeros == conv2d's zero padding.
    Hp = _round_up(H, 8)
    Wp = _round_up(W, 128)

    k1 = _gaussian_kernel_1d(K, NSIG)
    a_mat = jnp.asarray(_blur_matrix(Hp, k1, pad))      # (Hp, Hp), left multiply
    b_mat = jnp.asarray(_blur_matrix(Wp, k1, pad).T)    # (Wp, Wp), right multiply

    P = N * C
    xf = x.reshape(P, H, W).astype(jnp.float32)
    if (Hp, Wp) != (H, W):
        xf = jnp.pad(xf, ((0, 0), (0, Hp - H), (0, Wp - W)))

    bp = _planes_per_step(P, Hp * Wp * 4)
    grid = (P // bp,)

    out = pl.pallas_call(
        _one_gaussian_filter_kernel,
        out_shape=jax.ShapeDtypeStruct((P, Hp, Wp), jnp.float32),
        grid=grid,
        in_specs=[
            # Constant index maps: A/B are DMA'd once and stay resident in VMEM.
            pl.BlockSpec((Hp, Hp), lambda i: (0, 0)),
            pl.BlockSpec((Wp, Wp), lambda i: (0, 0)),
            pl.BlockSpec((bp, Hp, Wp), lambda i: (i, 0, 0)),
        ],
        out_specs=pl.BlockSpec((bp, Hp, Wp), lambda i: (i, 0, 0)),
        compiler_params=pltpu.CompilerParams(
            dimension_semantics=("parallel",),   # independent planes -> 2 TCs on v7x
            vmem_limit_bytes=_VMEM_LIMIT_BYTES),
    )(a_mat, b_mat, xf)

    if (Hp, Wp) != (H, W):
        out = out[:, :H, :W]
    return out.reshape(N, C, H, W)


def _reference(x: jax.Array) -> jax.Array:
    """Pure-JAX reference mirroring the PyTorch forward (per-channel conv2d)."""
    K = FILTER_WIDTH
    pad = K // 2
    k1 = _gaussian_kernel_1d(K, NSIG)
    w = jnp.asarray(np.outer(k1, k1).astype(np.float32)).reshape(1, 1, K, K)
    chans = []
    for c in range(3):
        xc = x[:, c:c + 1]
        g = lax.conv_general_dilated(
            xc, w, window_strides=(1, 1),
            padding=[(pad, pad), (pad, pad)],
            dimension_numbers=("NCHW", "OIHW", "NCHW"),
            precision=lax.Precision.HIGHEST)
        chans.append(g)
    g = jnp.concatenate(chans, axis=1)
    res = 4.0 * (x - g)
    res = jnp.where(res > 1.0, 1.0, res)
    res = jnp.where(res < -1.0, -1.0, res)
    return res


if __name__ == "__main__":
    key = jax.random.PRNGKey(0)
    # Small smoke-test shape (module default is size=256; the ones/minus_ones
    # buffers only broadcast the clamp constants, so any spatial size works).
    x = jax.random.normal(key, (2, 3, 16, 16), dtype=jnp.float32)

    out = jax.block_until_ready(one_gaussian_filter(x))
    ref = jax.block_until_ready(_reference(x))
    np.testing.assert_allclose(np.asarray(out), np.asarray(ref), atol=2e-5, rtol=2e-5)

    print("KERNEL_OK")
</pallas_src>

<mosaic_0001>
module attributes {stable_mosaic.version = 11 : i64} {
  func.func @_one_gaussian_filter_kernel(%arg0: i32, %arg1: memref<16x16xf32, #tpu.memory_space<vmem>>, %arg2: memref<128x128xf32, #tpu.memory_space<vmem>>, %arg3: memref<1x16x128xf32, #tpu.memory_space<vmem>>, %arg4: memref<1x16x128xf32, #tpu.memory_space<vmem>>) attributes {dimension_semantics = [#tpu.dimension_semantics<parallel>], iteration_bounds = array<i64: 6>, scalar_prefetch = 0 : i64, scratch_operands = 0 : i64, tpu.core_type = #tpu.core_type<tc>, window_params = [{pipeline_mode = #tpu.pipeline_mode<synchronous>, transform_indices = @transform_0, window_bounds = array<i64: 16, 16>}, {pipeline_mode = #tpu.pipeline_mode<synchronous>, transform_indices = @transform_1, window_bounds = array<i64: 128, 128>}, {transform_indices = @transform_2, window_bounds = array<i64: 1, 16, 128>}, {transform_indices = @transform_3, window_bounds = array<i64: 1, 16, 128>}]} {
    %c0 = arith.constant 0 : index
    %c0_0 = arith.constant 0 : index
    %0 = vector.load %arg1[%c0, %c0_0] : memref<16x16xf32, #tpu.memory_space<vmem>>, vector<16x16xf32>
    %c0_1 = arith.constant 0 : index
    %c0_2 = arith.constant 0 : index
    %1 = vector.load %arg2[%c0_1, %c0_2] : memref<128x128xf32, #tpu.memory_space<vmem>>, vector<128x128xf32>
    %c0_3 = arith.constant 0 : index
    %c0_4 = arith.constant 0 : index
    %c0_5 = arith.constant 0 : index
    %2 = vector.load %arg3[%c0_3, %c0_4, %c0_5] : memref<1x16x128xf32, #tpu.memory_space<vmem>>, vector<1x16x128xf32>
    %3 = vector.shape_cast %2 : vector<1x16x128xf32> to vector<16x128xf32>
    %cst = arith.constant dense<0.000000e+00> : vector<16x128xf32>
    %4 = tpu.matmul %3, %1, %cst {dimension_numbers = #tpu.dot_dimension_numbers<[1], [0], [0], [1], [0, 0, 1, 1], [], []>, precision = #tpu.contract_precision<fp32>} : vector<16x128xf32>, vector<128x128xf32>, vector<16x128xf32> -> vector<16x128xf32>
    %5 = vector.shape_cast %4 : vector<16x128xf32> to vector<1x16x128xf32>
    %6 = vector.shape_cast %5 : vector<1x16x128xf32> to vector<16x128xf32>
    %cst_6 = arith.constant dense<0.000000e+00> : vector<16x128xf32>
    %7 = tpu.matmul %0, %6, %cst_6 {dimension_numbers = #tpu.dot_dimension_numbers<[1], [0], [0], [1], [0, 0, 1, 1], [], []>, precision = #tpu.contract_precision<fp32>} : vector<16x16xf32>, vector<16x128xf32>, vector<16x128xf32> -> vector<16x128xf32>
    %8 = vector.shape_cast %2 : vector<1x16x128xf32> to vector<16x128xf32>
    %9 = arith.subf %8, %7 : vector<16x128xf32>
    %cst_7 = arith.constant 4.000000e+00 : f32
    %10 = vector.broadcast %cst_7 : f32 to vector<16x128xf32>
    %11 = arith.mulf %10, %9 : vector<16x128xf32>
    %cst_8 = arith.constant -1.000000e+00 : f32
    %cst_9 = arith.constant 1.000000e+00 : f32
    %12 = vector.broadcast %cst_8 : f32 to vector<16x128xf32>
    %13 = arith.maximumf %12, %11 : vector<16x128xf32>
    %14 = vector.broadcast %cst_9 : f32 to vector<16x128xf32>
    %15 = arith.minimumf %14, %13 : vector<16x128xf32>
    %c0_10 = arith.constant 0 : index
    %c0_11 = arith.constant 0 : index
    %c0_12 = arith.constant 0 : index
    %16 = vector.load %arg4[%c0_10, %c0_11, %c0_12] : memref<1x16x128xf32, #tpu.memory_space<vmem>>, vector<1x16x128xf32>
    %17 = vector.shape_cast %16 : vector<1x16x128xf32> to vector<16x128xf32>
    %18 = vector.shape_cast %15 : vector<16x128xf32> to vector<1x16x128xf32>
    tpu.vector_store %arg4[%c0_10, %c0_11, %c0_12], %18 {strides = array<i32>} : memref<1x16x128xf32, #tpu.memory_space<vmem>>, vector<1x16x128xf32>,
    return
  }
  func.func @transform_0(%arg0: i32) -> (i32, i32) {
    %c0_i32 = arith.constant 0 : i32
    %c0_i32_0 = arith.constant 0 : i32
    %c0_i32_1 = arith.constant 0 : i32
    return %c0_i32, %c0_i32_0 : i32, i32
  }
  func.func @transform_1(%arg0: i32) -> (i32, i32) {
    %c0_i32 = arith.constant 0 : i32
    %c0_i32_0 = arith.constant 0 : i32
    %c0_i32_1 = arith.constant 0 : i32
    return %c0_i32, %c0_i32_0 : i32, i32
  }
  func.func @transform_2(%arg0: i32) -> (i32, i32, i32) {
    %c0_i32 = arith.constant 0 : i32
    %c0_i32_0 = arith.constant 0 : i32
    %c0_i32_1 = arith.constant 0 : i32
    return %arg0, %c0_i32, %c0_i32_0 : i32, i32, i32
  }
  func.func @transform_3(%arg0: i32) -> (i32, i32, i32) {
    %c0_i32 = arith.constant 0 : i32
    %c0_i32_0 = arith.constant 0 : i32
    %c0_i32_1 = arith.constant 0 : i32
    return %arg0, %c0_i32, %c0_i32_0 : i32, i32, i32
  }
}

</mosaic_0001>

<llo_original>
// kernel: tpu_custom_call.1
$region0: #{tpu_custom_call.1}
  #allocation0 [shape = 'u32[]', space=smem, size = 0x4, offset = 0x4, fixed_abs, tag = 'smem constant byte address 0x4 - core index']
  #allocation1 [shape = 'u32[144,128]{1,0:T(1,128)}', space=vmem, size = 0x12000, scoped, tag = 'internal scratch']
  %s0 = inlined_call_operand.hbm [shape: f32[16,16], index: 0, kind: input, shape index: {}]
  %s1 = inlined_call_operand.hbm [shape: f32[128,128], index: 1, kind: input, shape index: {}]
  %s2 = inlined_call_operand.hbm [shape: f32[6,16,128], index: 2, kind: input, shape index: {}]
  %s3 = inlined_call_operand.hbm [shape: f32[6,16,128], index: 3, kind: output, shape index: {}]
  %s4 = sld [smem:[#allocation0]]
  $region57: #{tpu_custom_call.1} parent=0
    _
  %s6 = ssub.s32 1, %s4
  %s7 = scalar_select 0, %s6, %s4
  $region1: #{tpu_custom_call.1} parent=0
    #allocation2 [shape = 'u8[8192]{0}', space=vmem, size = 0x2000, scoped, tag = 'input window, operand 0, single buffered']
    #allocation3 [shape = 's32[2]{0}', space=sflag, size = 0x8, scoped, tag = 'scoped memory for tpu_custom_call.1']
    #allocation4 [shape = 's32[2]{0}', space=sflag, size = 0x8, scoped, tag = 'scoped memory for tpu_custom_call.1']
    #allocation5 [shape = 'u8[65536]{0}', space=vmem, size = 0x10000, scoped, tag = 'input window, operand 1, single buffered']
    #allocation6 [shape = 's32[1]{0}', space=sflag, size = 0x4, scoped, tag = 'scoped memory for tpu_custom_call.1']
    #allocation7 [shape = 'u8[16384]{0}', space=vmem, size = 0x4000, scoped, tag = 'input window, operand 2']
    #allocation8 [shape = 'u8[16384]{0}', space=vmem, size = 0x4000, scoped, tag = 'output window, operand 0']
    %8 = vsyncpa [#allocation3], 0
    %9 = vsyncpa [#allocation6], 0
    %10 = vsyncpa [#allocation4], 0
    %s11 = scalar_lea.sflag [#allocation4], 1
    %12 = vsyncpa %s11, 0
    loop: start=0, step=1, limit=8
    $region2: #{tpu_custom_call.1} parent=1 // loop_pre_header
      _
    $region3: #{tpu_custom_call.1} parent=1 // loop_header
      %s14 = sphi 0, %s18
      %p15 = scmp.ge.s32.totalorder %s14, 8
      %s22 = sphi 0, %s22
      %s24 = sphi 0, %s22
      %s25 = sphi 0, %s24
      %s39 = sphi 0, %s25
      %s43 = sphi 0, %s43
      %s45 = sphi 0, %s43
      %s46 = sphi 0, %s45
      %s60 = sphi 0, %s46
      %s66 = sphi 0, %s68
      %s69 = sphi 0, %s66
      %s70 = sphi 0, %s69
      %s86 = sphi 0, %s70
      %s92 = sphi 0, %s94
      %s95 = sphi 0, %s92
      %s96 = sphi 0, %s95
      %s112 = sphi 0, %s96
    $region4: #{tpu_custom_call.1} parent=1 // loop_header_branch
      %17 = sbr.rel (%p15) target = $region8
    $region5: #{tpu_custom_call.1} parent=1 // loop_body
      %s19 = ssub.s32 %s14, 1
      %s20 = ssub.s32 %s14, 2
      %s21 = sadd.s32 %s14, 1
      %s23 = sadd.s32 %s22, 1
      %p26 = scmp.eq.s32.totalorder %s14, 5
      %p27 = scmp.ne.s32.totalorder %s22, %s24
      %p28 = scmp.eq.s32.totalorder %s14, 0
      %p29 = por %p27, %p28
      %p30 = scmp.ne.s32.totalorder %s22, %s24
      %p31 = scmp.eq.s32.totalorder %s19, 5
      %p32 = por %p30, %p31
      %p33 = scmp.ne.s32.totalorder %s24, %s25
      %p34 = scmp.eq.s32.totalorder %s19, 0
      %p35 = por %p33, %p34
      %p36 = scmp.ne.s32.totalorder %s24, %s25
      %p37 = scmp.eq.s32.totalorder %s20, 5
      %p38 = por %p36, %p37
      %p40 = scmp.ne.s32.totalorder %s25, %s39
      %p41 = scmp.eq.s32.totalorder %s20, 0
      %p42 = por %p40, %p41
      %s44 = sadd.s32 %s43, 1
      %p47 = scmp.eq.s32.totalorder %s14, 5
      %p48 = scmp.ne.s32.totalorder %s43, %s45
      %p49 = scmp.eq.s32.totalorder %s14, 0
      %p50 = por %p48, %p49
      %p51 = scmp.ne.s32.totalorder %s43, %s45
      %p52 = scmp.eq.s32.totalorder %s19, 5
      %p53 = por %p51, %p52
      %p54 = scmp.ne.s32.totalorder %s45, %s46
      %p55 = scmp.eq.s32.totalorder %s19, 0
      %p56 = por %p54, %p55
      %p57 = scmp.ne.s32.totalorder %s45, %s46
      %p58 = scmp.eq.s32.totalorder %s20, 5
      %p59 = por %p57, %p58
      %p61 = scmp.ne.s32.totalorder %s46, %s60
      %p62 = scmp.eq.s32.totalorder %s20, 0
      %p63 = por %p61, %p62
      %s64 = ssub.s32 %s14, %s21
      %p65 = scmp.eq.s32.totalorder %s64, 0
      %s67 = sadd.s32 %s66, 1
      %s68 = scalar_select %p65, %s66, %s67
      %p71 = pneg %p65
      %p72 = scmp.eq.s32.totalorder %s14, 5
      %p73 = por %p71, %p72
      %p74 = scmp.ne.s32.totalorder %s66, %s69
      %p75 = scmp.eq.s32.totalorder %s14, 0
      %p76 = por %p74, %p75
      %p77 = scmp.ne.s32.totalorder %s66, %s69
      %p78 = scmp.eq.s32.totalorder %s19, 5
      %p79 = por %p77, %p78
      %p80 = scmp.ne.s32.totalorder %s69, %s70
      %p81 = scmp.eq.s32.totalorder %s19, 0
      %p82 = por %p80, %p81
      %p83 = scmp.ne.s32.totalorder %s69, %s70
      %p84 = scmp.eq.s32.totalorder %s20, 5
      %p85 = por %p83, %p84
      %p87 = scmp.ne.s32.totalorder %s70, %s86
      %p88 = scmp.eq.s32.totalorder %s20, 0
      %p89 = por %p87, %p88
      %s90 = ssub.s32 %s14, %s21
      %p91 = scmp.eq.s32.totalorder %s90, 0
      %s93 = sadd.s32 %s92, 1
      %s94 = scalar_select %p91, %s92, %s93
      %p97 = pneg %p91
      %p98 = scmp.eq.s32.totalorder %s14, 5
      %p99 = por %p97, %p98
      %p100 = scmp.ne.s32.totalorder %s92, %s95
      %p101 = scmp.eq.s32.totalorder %s14, 0
      %p102 = por %p100, %p101
      %p103 = scmp.ne.s32.totalorder %s92, %s95
      %p104 = scmp.eq.s32.totalorder %s19, 5
      %p105 = por %p103, %p104
      %p106 = scmp.ne.s32.totalorder %s95, %s96
      %p107 = scmp.eq.s32.totalorder %s19, 0
      %p108 = por %p106, %p107
      %p109 = scmp.ne.s32.totalorder %s95, %s96
      %p110 = scmp.eq.s32.totalorder %s20, 5
      %p111 = por %p109, %p110
      %p113 = scmp.ne.s32.totalorder %s96, %s112
      %p114 = scmp.eq.s32.totalorder %s20, 0
      %p115 = por %p113, %p114
      %p116 = scmp.le.s32.totalorder 1, %s14
      %p117 = scmp.lt.s32.totalorder %s14, 7
      %p118 = pnand %p116, %p117
      %p119 = pneg %p118
      // Predicated region
      $region9: #{tpu_custom_call.1} parent=5 // pred_check
        _
      $region10: #{tpu_custom_call.1} parent=5 // pred_check_branch
        %121 = sbr.rel (%p118) target = $region12
      $region11: #{tpu_custom_call.1} parent=5 // pred_region
        %s122 = ssub.s32 %s14, 1
        // Predicated region
        $region13: #{tpu_custom_call.1} parent=11 // pred_check
          %p123 = pneg %p35
        $region14: #{tpu_custom_call.1} parent=11 // pred_check_branch
          %125 = sbr.rel (%p123) target = $region16
        $region15: #{tpu_custom_call.1} parent=11 // pred_region
          %s127 = ssub.s32 256, 256
          %128 = vsyncadd [#allocation3], %s127
          %s129 = sshll.u32 [#allocation2], 4
          %s130 = int_to_ptr.vmem [resolvable:$true] %s129
          %135 = dma.hbm_to_vmem [thread:$0]  %s0, 256, %s130, [#allocation3], 128, 128, 8
        $region16: #{tpu_custom_call.1} parent=11 // pred_fallthru
          _
        // Predicated region
        $region17: #{tpu_custom_call.1} parent=11 // pred_check
          %p136 = pneg %p56
        $region18: #{tpu_custom_call.1} parent=11 // pred_check_branch
          %138 = sbr.rel (%p136) target = $region20
        $region19: #{tpu_custom_call.1} parent=11 // pred_region
          %s140 = ssub.s32 2048, 2048
          %141 = vsyncadd [#allocation6], %s140
          %s142 = sshll.u32 [#allocation5], 4
          %s143 = int_to_ptr.vmem [resolvable:$true] %s142
          %148 = dma.hbm_to_vmem [thread:$0]  %s1, 2048, %s143, [#allocation6], 128, 128, 8
        $region20: #{tpu_custom_call.1} parent=11 // pred_fallthru
          _
      $region12: #{tpu_custom_call.1} parent=5 // pred_fallthru
        _
      %p149 = scmp.lt.s32.totalorder %s14, 6
      // Predicated region
      $region21: #{tpu_custom_call.1} parent=5 // pred_check
        %p150 = pneg %p149
      $region22: #{tpu_custom_call.1} parent=5 // pred_check_branch
        %152 = sbr.rel (%p150) target = $region24
      $region23: #{tpu_custom_call.1} parent=5 // pred_region
        // Predicated region
        $region25: #{tpu_custom_call.1} parent=23 // pred_check
          %p153 = pneg %p76
        $region26: #{tpu_custom_call.1} parent=23 // pred_check_branch
          %155 = sbr.rel (%p153) target = $region28
        $region27: #{tpu_custom_call.1} parent=23 // pred_region
          %s156 = sand.u32 %s14, 1
          %s157 = scalar_lea.sflag [#allocation3], %s156
          %s158 = sand.u32 %s66, 1
          %s159 = smul.addr %s158, 16
          %s160 = scalar_lea.vmem [#allocation7], %s159
          %s162 = ssub.s32 256, 256
          %163 = vsyncadd %s157, %s162
          %s164 = smul.addr %s14, 2
          %s165 = smul.addr %s164, 128
          %s166 = scalar_lea.hbm %s2, %s165
          %s167 = sshll.u32 %s160, 4
          %s168 = int_to_ptr.vmem [resolvable:$true] %s167
          %173 = dma.hbm_to_vmem [thread:$0]  %s166, 256, %s168, %s157, 128, 128, 8
        $region28: #{tpu_custom_call.1} parent=23 // pred_fallthru
          _
      $region24: #{tpu_custom_call.1} parent=5 // pred_fallthru
        _
      %p174 = scmp.le.s32.totalorder 1, %s14
      %p175 = scmp.lt.s32.totalorder %s14, 7
      %p176 = pnand %p174, %p175
      %p177 = pneg %p176
      // Predicated region
      $region29: #{tpu_custom_call.1} parent=5 // pred_check
        _
      $region30: #{tpu_custom_call.1} parent=5 // pred_check_branch
        %179 = sbr.rel (%p176) target = $region32
      $region31: #{tpu_custom_call.1} parent=5 // pred_region
        %s180 = ssub.s32 %s14, 1
        // Predicated region
        $region33: #{tpu_custom_call.1} parent=31 // pred_check
          %p181 = pneg %p35
        $region34: #{tpu_custom_call.1} parent=31 // pred_check_branch
          %183 = sbr.rel (%p181) target = $region36
        $region35: #{tpu_custom_call.1} parent=31 // pred_region
          %184 = dma.done [#allocation3], 256
        $region36: #{tpu_custom_call.1} parent=31 // pred_fallthru
          _
        // Predicated region
        $region37: #{tpu_custom_call.1} parent=31 // pred_check
          %p185 = pneg %p56
        $region38: #{tpu_custom_call.1} parent=31 // pred_check_branch
          %187 = sbr.rel (%p185) target = $region40
        $region39: #{tpu_custom_call.1} parent=31 // pred_region
          %188 = dma.done [#allocation6], 2048
        $region40: #{tpu_custom_call.1} parent=31 // pred_fallthru
          _
        %s189 = sand.u32 %s19, 1
        %s190 = scalar_lea.sflag [#allocation3], %s189
        %s191 = sand.u32 %s69, 1
        %s192 = smul.addr %s191, 16
        %s193 = scalar_lea.vmem [#allocation7], %s192
        // Predicated region
        $region41: #{tpu_custom_call.1} parent=31 // pred_check
          %p194 = pneg %p82
        $region42: #{tpu_custom_call.1} parent=31 // pred_check_branch
          %196 = sbr.rel (%p194) target = $region44
        $region43: #{tpu_custom_call.1} parent=31 // pred_region
          %197 = dma.done %s190, 256
        $region44: #{tpu_custom_call.1} parent=31 // pred_fallthru
          _
        %p198 = pneg %p35
        %p199 = pneg %p32
        %p200 = pneg %p56
        %p201 = pneg %p53
        %s202 = sand.u32 %s19, 1
        %s203 = scalar_lea.sflag [#allocation3], %s202
        %s204 = sand.u32 %s69, 1
        %s205 = smul.addr %s204, 16
        %s206 = scalar_lea.vmem [#allocation7], %s205
        %p207 = pneg %p82
        %p208 = pneg %p79
        %p209 = pneg %p108
        %p210 = pneg %p105
        %s211 = sand.u32 %s95, 1
        %s212 = scalar_lea.sflag [#allocation4], %s211
        %s213 = sand.u32 %s95, 1
        %s214 = smul.addr %s213, 16
        %s215 = scalar_lea.vmem [#allocation8], %s214
        %v216 = vld [vmem:[#allocation2] sm:$0xff]
        %v217 = vld [vmem:[#allocation2 + $0x8] sm:$0xff]
        %v218 = vld [vmem:[#allocation5] sm:$0xff]
        %v219 = vld [vmem:[#allocation5 + $0x8] sm:$0xff]
        %v220 = vld [vmem:[#allocation5 + $0x10] sm:$0xff]
        %v221 = vld [vmem:[#allocation5 + $0x18] sm:$0xff]
        %v222 = vld [vmem:[#allocation5 + $0x20] sm:$0xff]
        %v223 = vld [vmem:[#allocation5 + $0x28] sm:$0xff]
        %v224 = vld [vmem:[#allocation5 + $0x30] sm:$0xff]
        %v225 = vld [vmem:[#allocation5 + $0x38] sm:$0xff]
        %v226 = vld [vmem:[#allocation5 + $0x40] sm:$0xff]
        %v227 = vld [vmem:[#allocation5 + $0x48] sm:$0xff]
        %v228 = vld [vmem:[#allocation5 + $0x50] sm:$0xff]
        %v229 = vld [vmem:[#allocation5 + $0x58] sm:$0xff]
        %v230 = vld [vmem:[#allocation5 + $0x60] sm:$0xff]
        %v231 = vld [vmem:[#allocation5 + $0x68] sm:$0xff]
        %v232 = vld [vmem:[#allocation5 + $0x70] sm:$0xff]
        %v233 = vld [vmem:[#allocation5 + $0x78] sm:$0xff]
        %v234 = vld [vmem:[%s193] sm:$0xff]
        %v235 = vld [vmem:[%s193 + $0x8] sm:$0xff]
        %236 = vmatprep.subr.mxu0 0.0
        %v237 = vand.u32 %v218, 4294901760
        %238 = vmatpush1.msra.mxu0 %v237
        %239 = vmatprep.subr.mxu0 0.0
        %v240 = vand.u32 %v219, 4294901760
        %241 = vmatpush1.msra.mxu0 %v240
        %242 = vmatprep.subr.mxu0 0.0
        %v243 = vand.u32 %v220, 4294901760
        %244 = vmatpush1.msra.mxu0 %v243
        %245 = vmatprep.subr.mxu0 0.0
        %v246 = vand.u32 %v221, 4294901760
        %247 = vmatpush1.msra.mxu0 %v246
        %248 = vmatprep.subr.mxu0 0.0
        %v249 = vand.u32 %v222, 4294901760
        %250 = vmatpush1.msra.mxu0 %v249
        %251 = vmatprep.subr.mxu0 0.0
        %v252 = vand.u32 %v223, 4294901760
        %253 = vmatpush1.msra.mxu0 %v252
        %254 = vmatprep.subr.mxu0 0.0
        %v255 = vand.u32 %v224, 4294901760
        %256 = vmatpush1.msra.mxu0 %v255
        %257 = vmatprep.subr.mxu0 0.0
        %v258 = vand.u32 %v225, 4294901760
        %259 = vmatpush1.msra.mxu0 %v258
        %260 = vmatprep.subr.mxu0 0.0
        %v261 = vand.u32 %v226, 4294901760
        %262 = vmatpush1.msra.mxu0 %v261
        %263 = vmatprep.subr.mxu0 0.0
        %v264 = vand.u32 %v227, 4294901760
        %265 = vmatpush1.msra.mxu0 %v264
        %266 = vmatprep.subr.mxu0 0.0
        %v267 = vand.u32 %v228, 4294901760
        %268 = vmatpush1.msra.mxu0 %v267
        %269 = vmatprep.subr.mxu0 0.0
        %v270 = vand.u32 %v229, 4294901760
        %271 = vmatpush1.msra.mxu0 %v270
        %272 = vmatprep.subr.mxu0 0.0
        %v273 = vand.u32 %v230, 4294901760
        %274 = vmatpush1.msra.mxu0 %v273
        %275 = vmatprep.subr.mxu0 0.0
        %v276 = vand.u32 %v231, 4294901760
        %277 = vmatpush1.msra.mxu0 %v276
        %278 = vmatprep.subr.mxu0 0.0
        %v279 = vand.u32 %v232, 4294901760
        %280 = vmatpush1.msra.mxu0 %v279
        %281 = vmatprep.subr.mxu0 0.0
        %v282 = vand.u32 %v233, 4294901760
        %283 = vmatpush1.msra.mxu0 %v282
        %284 = vmatprep.subr.mxu0 0.0
        %285 = vmatpush1.msra.mxu0 0.0
        %286 = vmatprep.subr.mxu0 0.0
        %287 = vmatpush1.msra.mxu0 0.0
        %288 = vmatprep.subr.mxu0 0.0
        %289 = vmatpush1.msra.mxu0 0.0
        %290 = vmatprep.subr.mxu0 0.0
        %291 = vmatpush1.msra.mxu0 0.0
        %292 = vmatprep.subr.mxu0 0.0
        %293 = vmatpush1.msra.mxu0 0.0
        %294 = vmatprep.subr.mxu0 0.0
        %295 = vmatpush1.msra.mxu0 0.0
        %296 = vmatprep.subr.mxu0 0.0
        %297 = vmatpush1.msra.mxu0 0.0
        %298 = vmatprep.subr.mxu0 0.0
        %299 = vmatpush1.msra.mxu0 0.0
        %300 = vmatprep.subr.mxu0 0.0
        %301 = vmatpush1.msra.mxu0 0.0
        %302 = vmatprep.subr.mxu0 0.0
        %303 = vmatpush1.msra.mxu0 0.0
        %304 = vmatprep.subr.mxu0 0.0
        %305 = vmatpush1.msra.mxu0 0.0
        %306 = vmatprep.subr.mxu0 0.0
        %307 = vmatpush1.msra.mxu0 0.0
        %308 = vmatprep.subr.mxu0 0.0
        %309 = vmatpush1.msra.mxu0 0.0
        %310 = vmatprep.subr.mxu0 0.0
        %311 = vmatpush1.msra.mxu0 0.0
        %312 = vmatprep.subr.mxu0 0.0
        %313 = vmatpush1.msra.mxu0 0.0
        %314 = vmatprep.subr.mxu0 0.0
        %315 = vmatpush1.msra.mxu0 0.0
        %316 = vmatprep.mubr.f32.mxu0 0.0
        %v317 = vand.u32 %v234, 4294901760
        %v318 = vsub.f32 %v234, %v317
        %v319 = vand.u32 %v318, 4294901760
        %v320 = vsub.f32 %v318, %v319
        %v321 = vand.u32 %v320, 4294901760
        %322 = vmatmul.mubr.f32.gmra.mrb[0].mxu0 %v321
        %v323 = vpop.f32.mrb[0].mxu0
        %v324 = vadd.f32 0.0, %v323
        %v325 = vpop.f32.mrb[0].mxu0
        %326 = vmatprep.mubr.f32.mxu0 0.0
        %v327 = vand.u32 %v235, 4294901760
        %v328 = vsub.f32 %v235, %v327
        %v329 = vand.u32 %v328, 4294901760
        %v330 = vsub.f32 %v328, %v329
        %v331 = vand.u32 %v330, 4294901760
        %332 = vmatmul.mubr.f32.gmra.mrb[0].mxu0 %v331
        %v333 = vpop.f32.mrb[0].mxu0
        %v334 = vadd.f32 0.0, %v333
        %v335 = vpop.f32.mrb[0].mxu0
        %336 = vdwg.mxu0
        %337 = vmatprep.subr.mxu0 0.0
        %v338 = vand.u32 %v218, 4294901760
        %v339 = vsub.f32 %v218, %v338
        %v340 = vand.u32 %v339, 4294901760
        %v341 = vsub.f32 %v339, %v340
        %v342 = vand.u32 %v341, 4294901760
        %343 = vmatpush1.msra.mxu0 %v342
        %344 = vmatprep.subr.mxu0 0.0
        %v345 = vand.u32 %v219, 4294901760
        %v346 = vsub.f32 %v219, %v345
        %v347 = vand.u32 %v346, 4294901760
        %v348 = vsub.f32 %v346, %v347
        %v349 = vand.u32 %v348, 4294901760
        %350 = vmatpush1.msra.mxu0 %v349
        %351 = vmatprep.subr.mxu0 0.0
        %v352 = vand.u32 %v220, 4294901760
        %v353 = vsub.f32 %v220, %v352
        %v354 = vand.u32 %v353, 4294901760
        %v355 = vsub.f32 %v353, %v354
        %v356 = vand.u32 %v355, 4294901760
        %357 = vmatpush1.msra.mxu0 %v356
        %358 = vmatprep.subr.mxu0 0.0
        %v359 = vand.u32 %v221, 4294901760
        %v360 = vsub.f32 %v221, %v359
        %v361 = vand.u32 %v360, 4294901760
        %v362 = vsub.f32 %v360, %v361
        %v363 = vand.u32 %v362, 4294901760
        %364 = vmatpush1.msra.mxu0 %v363
        %365 = vmatprep.subr.mxu0 0.0
        %v366 = vand.u32 %v222, 4294901760
        %v367 = vsub.f32 %v222, %v366
        %v368 = vand.u32 %v367, 4294901760
        %v369 = vsub.f32 %v367, %v368
        %v370 = vand.u32 %v369, 4294901760
        %371 = vmatpush1.msra.mxu0 %v370
        %372 = vmatprep.subr.mxu0 0.0
        %v373 = vand.u32 %v223, 4294901760
        %v374 = vsub.f32 %v223, %v373
        %v375 = vand.u32 %v374, 4294901760
        %v376 = vsub.f32 %v374, %v375
        %v377 = vand.u32 %v376, 4294901760
        %378 = vmatpush1.msra.mxu0 %v377
        %379 = vmatprep.subr.mxu0 0.0
        %v380 = vand.u32 %v224, 4294901760
        %v381 = vsub.f32 %v224, %v380
        %v382 = vand.u32 %v381, 4294901760
        %v383 = vsub.f32 %v381, %v382
        %v384 = vand.u32 %v383, 4294901760
        %385 = vmatpush1.msra.mxu0 %v384
        %386 = vmatprep.subr.mxu0 0.0
        %v387 = vand.u32 %v225, 4294901760
        %v388 = vsub.f32 %v225, %v387
        %v389 = vand.u32 %v388, 4294901760
        %v390 = vsub.f32 %v388, %v389
        %v391 = vand.u32 %v390, 4294901760
        %392 = vmatpush1.msra.mxu0 %v391
        %393 = vmatprep.subr.mxu0 0.0
        %v394 = vand.u32 %v226, 4294901760
        %v395 = vsub.f32 %v226, %v394
        %v396 = vand.u32 %v395, 4294901760
        %v397 = vsub.f32 %v395, %v396
        %v398 = vand.u32 %v397, 4294901760
        %399 = vmatpush1.msra.mxu0 %v398
        %400 = vmatprep.subr.mxu0 0.0
        %v401 = vand.u32 %v227, 4294901760
        %v402 = vsub.f32 %v227, %v401
        %v403 = vand.u32 %v402, 4294901760
        %v404 = vsub.f32 %v402, %v403
        %v405 = vand.u32 %v404, 4294901760
        %406 = vmatpush1.msra.mxu0 %v405
        %407 = vmatprep.subr.mxu0 0.0
        %v408 = vand.u32 %v228, 4294901760
        %v409 = vsub.f32 %v228, %v408
        %v410 = vand.u32 %v409, 4294901760
        %v411 = vsub.f32 %v409, %v410
        %v412 = vand.u32 %v411, 4294901760
        %413 = vmatpush1.msra.mxu0 %v412
        %414 = vmatprep.subr.mxu0 0.0
        %v415 = vand.u32 %v229, 4294901760
        %v416 = vsub.f32 %v229, %v415
        %v417 = vand.u32 %v416, 4294901760
        %v418 = vsub.f32 %v416, %v417
        %v419 = vand.u32 %v418, 4294901760
        %420 = vmatpush1.msra.mxu0 %v419
        %421 = vmatprep.subr.mxu0 0.0
        %v422 = vand.u32 %v230, 4294901760
        %v423 = vsub.f32 %v230, %v422
        %v424 = vand.u32 %v423, 4294901760
        %v425 = vsub.f32 %v423, %v424
        %v426 = vand.u32 %v425, 4294901760
        %427 = vmatpush1.msra.mxu0 %v426
        %428 = vmatprep.subr.mxu0 0.0
        %v429 = vand.u32 %v231, 4294901760
        %v430 = vsub.f32 %v231, %v429
        %v431 = vand.u32 %v430, 4294901760
        %v432 = vsub.f32 %v430, %v431
        %v433 = vand.u32 %v432, 4294901760
        %434 = vmatpush1.msra.mxu0 %v433
        %435 = vmatprep.subr.mxu0 0.0
        %v436 = vand.u32 %v232, 4294901760
        %v437 = vsub.f32 %v232, %v436
        %v438 = vand.u32 %v437, 4294901760
        %v439 = vsub.f32 %v437, %v438
        %v440 = vand.u32 %v439, 4294901760
        %441 = vmatpush1.msra.mxu0 %v440
        %442 = vmatprep.subr.mxu0 0.0
        %v443 = vand.u32 %v233, 4294901760
        %v444 = vsub.f32 %v233, %v443
        %v445 = vand.u32 %v444, 4294901760
        %v446 = vsub.f32 %v444, %v445
        %v447 = vand.u32 %v446, 4294901760
        %448 = vmatpush1.msra.mxu0 %v447
        %449 = vmatprep.subr.mxu0 0.0
        %450 = vmatpush1.msra.mxu0 0.0
        %451 = vmatprep.subr.mxu0 0.0
        %452 = vmatpush1.msra.mxu0 0.0
        %453 = vmatprep.subr.mxu0 0.0
        %454 = vmatpush1.msra.mxu0 0.0
        %455 = vmatprep.subr.mxu0 0.0
        %456 = vmatpush1.msra.mxu0 0.0
        %457 = vmatprep.subr.mxu0 0.0
        %458 = vmatpush1.msra.mxu0 0.0
        %459 = vmatprep.subr.mxu0 0.0
        %460 = vmatpush1.msra.mxu0 0.0
        %461 = vmatprep.subr.mxu0 0.0
        %462 = vmatpush1.msra.mxu0 0.0
        %463 = vmatprep.subr.mxu0 0.0
        %464 = vmatpush1.msra.mxu0 0.0
        %465 = vmatprep.subr.mxu0 0.0
        %466 = vmatpush1.msra.mxu0 0.0
        %467 = vmatprep.subr.mxu0 0.0
        %468 = vmatpush1.msra.mxu0 0.0
        %469 = vmatprep.subr.mxu0 0.0
        %470 = vmatpush1.msra.mxu0 0.0
        %471 = vmatprep.subr.mxu0 0.0
        %472 = vmatpush1.msra.mxu0 0.0
        %473 = vmatprep.subr.mxu0 0.0
        %474 = vmatpush1.msra.mxu0 0.0
        %475 = vmatprep.subr.mxu0 0.0
        %476 = vmatpush1.msra.mxu0 0.0
        %477 = vmatprep.subr.mxu0 0.0
        %478 = vmatpush1.msra.mxu0 0.0
        %479 = vmatprep.subr.mxu0 0.0
        %480 = vmatpush1.msra.mxu0 0.0
        %481 = vmatprep.mubr.f32.mxu0 0.0
        %v482 = vand.u32 %v234, 4294901760
        %483 = vmatmul.mubr.f32.gmra.mrb[0].mxu0 %v482
        %v484 = vpop.f32.mrb[0].mxu0
        %v485 = vadd.f32 %v324, %v484
        %v486 = vpop.f32.mrb[0].mxu0
        %487 = vmatprep.mubr.f32.mxu0 0.0
        %v488 = vand.u32 %v235, 4294901760
        %489 = vmatmul.mubr.f32.gmra.mrb[0].mxu0 %v488
        %v490 = vpop.f32.mrb[0].mxu0
        %v491 = vadd.f32 %v334, %v490
        %v492 = vpop.f32.mrb[0].mxu0
        %493 = vdwg.mxu0
        %494 = vmatprep.subr.mxu0 0.0
        %v495 = vand.u32 %v218, 4294901760
        %v496 = vsub.f32 %v218, %v495
        %497 = vmatpush1.msra.mxu0 %v496
        %498 = vmatprep.subr.mxu0 0.0
        %v499 = vand.u32 %v219, 4294901760
        %v500 = vsub.f32 %v219, %v499
        %501 = vmatpush1.msra.mxu0 %v500
        %502 = vmatprep.subr.mxu0 0.0
        %v503 = vand.u32 %v220, 4294901760
        %v504 = vsub.f32 %v220, %v503
        %505 = vmatpush1.msra.mxu0 %v504
        %506 = vmatprep.subr.mxu0 0.0
        %v507 = vand.u32 %v221, 4294901760
        %v508 = vsub.f32 %v221, %v507
        %509 = vmatpush1.msra.mxu0 %v508
        %510 = vmatprep.subr.mxu0 0.0
        %v511 = vand.u32 %v222, 4294901760
        %v512 = vsub.f32 %v222, %v511
        %513 = vmatpush1.msra.mxu0 %v512
        %514 = vmatprep.subr.mxu0 0.0
        %v515 = vand.u32 %v223, 4294901760
        %v516 = vsub.f32 %v223, %v515
        %517 = vmatpush1.msra.mxu0 %v516
        %518 = vmatprep.subr.mxu0 0.0
        %v519 = vand.u32 %v224, 4294901760
        %v520 = vsub.f32 %v224, %v519
        %521 = vmatpush1.msra.mxu0 %v520
        %522 = vmatprep.subr.mxu0 0.0
        %v523 = vand.u32 %v225, 4294901760
        %v524 = vsub.f32 %v225, %v523
        %525 = vmatpush1.msra.mxu0 %v524
        %526 = vmatprep.subr.mxu0 0.0
        %v527 = vand.u32 %v226, 4294901760
        %v528 = vsub.f32 %v226, %v527
        %529 = vmatpush1.msra.mxu0 %v528
        %530 = vmatprep.subr.mxu0 0.0
        %v531 = vand.u32 %v227, 4294901760
        %v532 = vsub.f32 %v227, %v531
        %533 = vmatpush1.msra.mxu0 %v532
        %534 = vmatprep.subr.mxu0 0.0
        %v535 = vand.u32 %v228, 4294901760
        %v536 = vsub.f32 %v228, %v535
        %537 = vmatpush1.msra.mxu0 %v536
        %538 = vmatprep.subr.mxu0 0.0
        %v539 = vand.u32 %v229, 4294901760
        %v540 = vsub.f32 %v229, %v539
        %541 = vmatpush1.msra.mxu0 %v540
        %542 = vmatprep.subr.mxu0 0.0
        %v543 = vand.u32 %v230, 4294901760
        %v544 = vsub.f32 %v230, %v543
        %545 = vmatpush1.msra.mxu0 %v544
        %546 = vmatprep.subr.mxu0 0.0
        %v547 = vand.u32 %v231, 4294901760
        %v548 = vsub.f32 %v231, %v547
        %549 = vmatpush1.msra.mxu0 %v548
        %550 = vmatprep.subr.mxu0 0.0
        %v551 = vand.u32 %v232, 4294901760
        %v552 = vsub.f32 %v232, %v551
        %553 = vmatpush1.msra.mxu0 %v552
        %554 = vmatprep.subr.mxu0 0.0
        %v555 = vand.u32 %v233, 4294901760
        %v556 = vsub.f32 %v233, %v555
        %557 = vmatpush1.msra.mxu0 %v556
        %558 = vmatprep.subr.mxu0 0.0
        %559 = vmatpush1.msra.mxu0 0.0
        %560 = vmatprep.subr.mxu0 0.0
        %561 = vmatpush1.msra.mxu0 0.0
        %562 = vmatprep.subr.mxu0 0.0
        %563 = vmatpush1.msra.mxu0 0.0
        %564 = vmatprep.subr.mxu0 0.0
        %565 = vmatpush1.msra.mxu0 0.0
        %566 = vmatprep.subr.mxu0 0.0
        %567 = vmatpush1.msra.mxu0 0.0
        %568 = vmatprep.subr.mxu0 0.0
        %569 = vmatpush1.msra.mxu0 0.0
        %570 = vmatprep.subr.mxu0 0.0
        %571 = vmatpush1.msra.mxu0 0.0
        %572 = vmatprep.subr.mxu0 0.0
        %573 = vmatpush1.msra.mxu0 0.0
        %574 = vmatprep.subr.mxu0 0.0
        %575 = vmatpush1.msra.mxu0 0.0
        %576 = vmatprep.subr.mxu0 0.0
        %577 = vmatpush1.msra.mxu0 0.0
        %578 = vmatprep.subr.mxu0 0.0
        %579 = vmatpush1.msra.mxu0 0.0
        %580 = vmatprep.subr.mxu0 0.0
        %581 = vmatpush1.msra.mxu0 0.0
        %582 = vmatprep.subr.mxu0 0.0
        %583 = vmatpush1.msra.mxu0 0.0
        %584 = vmatprep.subr.mxu0 0.0
        %585 = vmatpush1.msra.mxu0 0.0
        %586 = vmatprep.subr.mxu0 0.0
        %587 = vmatpush1.msra.mxu0 0.0
        %588 = vmatprep.subr.mxu0 0.0
        %589 = vmatpush1.msra.mxu0 0.0
        %590 = vmatprep.mubr.f32.mxu0 0.0
        %v591 = vand.u32 %v234, 4294901760
        %v592 = vsub.f32 %v234, %v591
        %593 = vmatmul.mubr.f32.gmra.mrb[0].mxu0 %v592
        %v594 = vpop.f32.mrb[0].mxu0
        %v595 = vadd.f32 %v485, %v594
        %v596 = vpop.f32.mrb[0].mxu0
        %597 = vmatprep.mubr.f32.mxu0 0.0
        %v598 = vand.u32 %v235, 4294901760
        %v599 = vsub.f32 %v235, %v598
        %600 = vmatmul.mubr.f32.gmra.mrb[0].mxu0 %v599
        %v601 = vpop.f32.mrb[0].mxu0
        %v602 = vadd.f32 %v491, %v601
        %v603 = vpop.f32.mrb[0].mxu0
        %604 = vdwg.mxu0
        %605 = vmatprep.subr.mxu0 0.0
        %v606 = vand.u32 %v218, 4294901760
        %607 = vmatpush1.msra.mxu0 %v606
        %608 = vmatprep.subr.mxu0 0.0
        %v609 = vand.u32 %v219, 4294901760
        %610 = vmatpush1.msra.mxu0 %v609
        %611 = vmatprep.subr.mxu0 0.0
        %v612 = vand.u32 %v220, 4294901760
        %613 = vmatpush1.msra.mxu0 %v612
        %614 = vmatprep.subr.mxu0 0.0
        %v615 = vand.u32 %v221, 4294901760
        %616 = vmatpush1.msra.mxu0 %v615
        %617 = vmatprep.subr.mxu0 0.0
        %v618 = vand.u32 %v222, 4294901760
        %619 = vmatpush1.msra.mxu0 %v618
        %620 = vmatprep.subr.mxu0 0.0
        %v621 = vand.u32 %v223, 4294901760
        %622 = vmatpush1.msra.mxu0 %v621
        %623 = vmatprep.subr.mxu0 0.0
        %v624 = vand.u32 %v224, 4294901760
        %625 = vmatpush1.msra.mxu0 %v624
        %626 = vmatprep.subr.mxu0 0.0
        %v627 = vand.u32 %v225, 4294901760
        %628 = vmatpush1.msra.mxu0 %v627
        %629 = vmatprep.subr.mxu0 0.0
        %v630 = vand.u32 %v226, 4294901760
        %631 = vmatpush1.msra.mxu0 %v630
        %632 = vmatprep.subr.mxu0 0.0
        %v633 = vand.u32 %v227, 4294901760
        %634 = vmatpush1.msra.mxu0 %v633
        %635 = vmatprep.subr.mxu0 0.0
        %v636 = vand.u32 %v228, 4294901760
        %637 = vmatpush1.msra.mxu0 %v636
        %638 = vmatprep.subr.mxu0 0.0
        %v639 = vand.u32 %v229, 4294901760
        %640 = vmatpush1.msra.mxu0 %v639
        %641 = vmatprep.subr.mxu0 0.0
        %v642 = vand.u32 %v230, 4294901760
        %643 = vmatpush1.msra.mxu0 %v642
        %644 = vmatprep.subr.mxu0 0.0
        %v645 = vand.u32 %v231, 4294901760
        %646 = vmatpush1.msra.mxu0 %v645
        %647 = vmatprep.subr.mxu0 0.0
        %v648 = vand.u32 %v232, 4294901760
        %649 = vmatpush1.msra.mxu0 %v648
        %650 = vmatprep.subr.mxu0 0.0
        %v651 = vand.u32 %v233, 4294901760
        %652 = vmatpush1.msra.mxu0 %v651
        %653 = vmatprep.subr.mxu0 0.0
        %654 = vmatpush1.msra.mxu0 0.0
        %655 = vmatprep.subr.mxu0 0.0
        %656 = vmatpush1.msra.mxu0 0.0
        %657 = vmatprep.subr.mxu0 0.0
        %658 = vmatpush1.msra.mxu0 0.0
        %659 = vmatprep.subr.mxu0 0.0
        %660 = vmatpush1.msra.mxu0 0.0
        %661 = vmatprep.subr.mxu0 0.0
        %662 = vmatpush1.msra.mxu0 0.0
        %663 = vmatprep.subr.mxu0 0.0
        %664 = vmatpush1.msra.mxu0 0.0
        %665 = vmatprep.subr.mxu0 0.0
        %666 = vmatpush1.msra.mxu0 0.0
        %667 = vmatprep.subr.mxu0 0.0
        %668 = vmatpush1.msra.mxu0 0.0
        %669 = vmatprep.subr.mxu0 0.0
        %670 = vmatpush1.msra.mxu0 0.0
        %671 = vmatprep.subr.mxu0 0.0
        %672 = vmatpush1.msra.mxu0 0.0
        %673 = vmatprep.subr.mxu0 0.0
        %674 = vmatpush1.msra.mxu0 0.0
        %675 = vmatprep.subr.mxu0 0.0
        %676 = vmatpush1.msra.mxu0 0.0
        %677 = vmatprep.subr.mxu0 0.0
        %678 = vmatpush1.msra.mxu0 0.0
        %679 = vmatprep.subr.mxu0 0.0
        %680 = vmatpush1.msra.mxu0 0.0
        %681 = vmatprep.subr.mxu0 0.0
        %682 = vmatpush1.msra.mxu0 0.0
        %683 = vmatprep.subr.mxu0 0.0
        %684 = vmatpush1.msra.mxu0 0.0
        %685 = vmatprep.mubr.f32.mxu0 0.0
        %v686 = vand.u32 %v234, 4294901760
        %v687 = vsub.f32 %v234, %v686
        %v688 = vand.u32 %v687, 4294901760
        %689 = vmatmul.mubr.f32.gmra.mrb[0].mxu0 %v688
        %v690 = vpop.f32.mrb[0].mxu0
        %v691 = vadd.f32 %v595, %v690
        %v692 = vpop.f32.mrb[0].mxu0
        %693 = vmatprep.mubr.f32.mxu0 0.0
        %v694 = vand.u32 %v235, 4294901760
        %v695 = vsub.f32 %v235, %v694
        %v696 = vand.u32 %v695, 4294901760
        %697 = vmatmul.mubr.f32.gmra.mrb[0].mxu0 %v696
        %v698 = vpop.f32.mrb[0].mxu0
        %v699 = vadd.f32 %v602, %v698
        %v700 = vpop.f32.mrb[0].mxu0
        %701 = vdwg.mxu0
        %702 = vmatprep.subr.mxu0 0.0
        %v703 = vand.u32 %v218, 4294901760
        %v704 = vsub.f32 %v218, %v703
        %v705 = vand.u32 %v704, 4294901760
        %706 = vmatpush1.msra.mxu0 %v705
        %707 = vmatprep.subr.mxu0 0.0
        %v708 = vand.u32 %v219, 4294901760
        %v709 = vsub.f32 %v219, %v708
        %v710 = vand.u32 %v709, 4294901760
        %711 = vmatpush1.msra.mxu0 %v710
        %712 = vmatprep.subr.mxu0 0.0
        %v713 = vand.u32 %v220, 4294901760
        %v714 = vsub.f32 %v220, %v713
        %v715 = vand.u32 %v714, 4294901760
        %716 = vmatpush1.msra.mxu0 %v715
        %717 = vmatprep.subr.mxu0 0.0
        %v718 = vand.u32 %v221, 4294901760
        %v719 = vsub.f32 %v221, %v718
        %v720 = vand.u32 %v719, 4294901760
        %721 = vmatpush1.msra.mxu0 %v720
        %722 = vmatprep.subr.mxu0 0.0
        %v723 = vand.u32 %v222, 4294901760
        %v724 = vsub.f32 %v222, %v723
        %v725 = vand.u32 %v724, 4294901760
        %726 = vmatpush1.msra.mxu0 %v725
        %727 = vmatprep.subr.mxu0 0.0
        %v728 = vand.u32 %v223, 4294901760
        %v729 = vsub.f32 %v223, %v728
        %v730 = vand.u32 %v729, 4294901760
        %731 = vmatpush1.msra.mxu0 %v730
        %732 = vmatprep.subr.mxu0 0.0
        %v733 = vand.u32 %v224, 4294901760
        %v734 = vsub.f32 %v224, %v733
        %v735 = vand.u32 %v734, 4294901760
        %736 = vmatpush1.msra.mxu0 %v735
        %737 = vmatprep.subr.mxu0 0.0
        %v738 = vand.u32 %v225, 4294901760
        %v739 = vsub.f32 %v225, %v738
        %v740 = vand.u32 %v739, 4294901760
        %741 = vmatpush1.msra.mxu0 %v740
        %742 = vmatprep.subr.mxu0 0.0
        %v743 = vand.u32 %v226, 4294901760
        %v744 = vsub.f32 %v226, %v743
        %v745 = vand.u32 %v744, 4294901760
        %746 = vmatpush1.msra.mxu0 %v745
        %747 = vmatprep.subr.mxu0 0.0
        %v748 = vand.u32 %v227, 4294901760
        %v749 = vsub.f32 %v227, %v748
        %v750 = vand.u32 %v749, 4294901760
        %751 = vmatpush1.msra.mxu0 %v750
        %752 = vmatprep.subr.mxu0 0.0
        %v753 = vand.u32 %v228, 4294901760
        %v754 = vsub.f32 %v228, %v753
        %v755 = vand.u32 %v754, 4294901760
        %756 = vmatpush1.msra.mxu0 %v755
        %757 = vmatprep.subr.mxu0 0.0
        %v758 = vand.u32 %v229, 4294901760
        %v759 = vsub.f32 %v229, %v758
        %v760 = vand.u32 %v759, 4294901760
        %761 = vmatpush1.msra.mxu0 %v760
        %762 = vmatprep.subr.mxu0 0.0
        %v763 = vand.u32 %v230, 4294901760
        %v764 = vsub.f32 %v230, %v763
        %v765 = vand.u32 %v764, 4294901760
        %766 = vmatpush1.msra.mxu0 %v765
        %767 = vmatprep.subr.mxu0 0.0
        %v768 = vand.u32 %v231, 4294901760
        %v769 = vsub.f32 %v231, %v768
        %v770 = vand.u32 %v769, 4294901760
        %771 = vmatpush1.msra.mxu0 %v770
        %772 = vmatprep.subr.mxu0 0.0
        %v773 = vand.u32 %v232, 4294901760
        %v774 = vsub.f32 %v232, %v773
        %v775 = vand.u32 %v774, 4294901760
        %776 = vmatpush1.msra.mxu0 %v775
        %777 = vmatprep.subr.mxu0 0.0
        %v778 = vand.u32 %v233, 4294901760
        %v779 = vsub.f32 %v233, %v778
        %v780 = vand.u32 %v779, 4294901760
        %781 = vmatpush1.msra.mxu0 %v780
        %782 = vmatprep.subr.mxu0 0.0
        %783 = vmatpush1.msra.mxu0 0.0
        %784 = vmatprep.subr.mxu0 0.0
        %785 = vmatpush1.msra.mxu0 0.0
        %786 = vmatprep.subr.mxu0 0.0
        %787 = vmatpush1.msra.mxu0 0.0
        %788 = vmatprep.subr.mxu0 0.0
        %789 = vmatpush1.msra.mxu0 0.0
        %790 = vmatprep.subr.mxu0 0.0
        %791 = vmatpush1.msra.mxu0 0.0
        %792 = vmatprep.subr.mxu0 0.0
        %793 = vmatpush1.msra.mxu0 0.0
        %794 = vmatprep.subr.mxu0 0.0
        %795 = vmatpush1.msra.mxu0 0.0
        %796 = vmatprep.subr.mxu0 0.0
        %797 = vmatpush1.msra.mxu0 0.0
        %798 = vmatprep.subr.mxu0 0.0
        %799 = vmatpush1.msra.mxu0 0.0
        %800 = vmatprep.subr.mxu0 0.0
        %801 = vmatpush1.msra.mxu0 0.0
        %802 = vmatprep.subr.mxu0 0.0
        %803 = vmatpush1.msra.mxu0 0.0
        %804 = vmatprep.subr.mxu0 0.0
        %805 = vmatpush1.msra.mxu0 0.0
        %806 = vmatprep.subr.mxu0 0.0
        %807 = vmatpush1.msra.mxu0 0.0
        %808 = vmatprep.subr.mxu0 0.0
        %809 = vmatpush1.msra.mxu0 0.0
        %810 = vmatprep.subr.mxu0 0.0
        %811 = vmatpush1.msra.mxu0 0.0
        %812 = vmatprep.subr.mxu0 0.0
        %813 = vmatpush1.msra.mxu0 0.0
        %814 = vmatprep.mubr.f32.mxu0 0.0
        %v815 = vand.u32 %v234, 4294901760
        %816 = vmatmul.mubr.f32.gmra.mrb[0].mxu0 %v815
        %v817 = vpop.f32.mrb[0].mxu0
        %v818 = vadd.f32 %v691, %v817
        %v819 = vpop.f32.mrb[0].mxu0
        %820 = vmatprep.mubr.f32.mxu0 0.0
        %v821 = vand.u32 %v235, 4294901760
        %822 = vmatmul.mubr.f32.gmra.mrb[0].mxu0 %v821
        %v823 = vpop.f32.mrb[0].mxu0
        %v824 = vadd.f32 %v699, %v823
        %v825 = vpop.f32.mrb[0].mxu0
        %826 = vdwg.mxu0
        %827 = vmatprep.subr.mxu0 0.0
        %v828 = vand.u32 %v218, 4294901760
        %829 = vmatpush1.msra.mxu0 %v828
        %830 = vmatprep.subr.mxu0 0.0
        %v831 = vand.u32 %v219, 4294901760
        %832 = vmatpush1.msra.mxu0 %v831
        %833 = vmatprep.subr.mxu0 0.0
        %v834 = vand.u32 %v220, 4294901760
        %835 = vmatpush1.msra.mxu0 %v834
        %836 = vmatprep.subr.mxu0 0.0
        %v837 = vand.u32 %v221, 4294901760
        %838 = vmatpush1.msra.mxu0 %v837
        %839 = vmatprep.subr.mxu0 0.0
        %v840 = vand.u32 %v222, 4294901760
        %841 = vmatpush1.msra.mxu0 %v840
        %842 = vmatprep.subr.mxu0 0.0
        %v843 = vand.u32 %v223, 4294901760
        %844 = vmatpush1.msra.mxu0 %v843
        %845 = vmatprep.subr.mxu0 0.0
        %v846 = vand.u32 %v224, 4294901760
        %847 = vmatpush1.msra.mxu0 %v846
        %848 = vmatprep.subr.mxu0 0.0
        %v849 = vand.u32 %v225, 4294901760
        %850 = vmatpush1.msra.mxu0 %v849
        %851 = vmatprep.subr.mxu0 0.0
        %v852 = vand.u32 %v226, 4294901760
        %853 = vmatpush1.msra.mxu0 %v852
        %854 = vmatprep.subr.mxu0 0.0
        %v855 = vand.u32 %v227, 4294901760
        %856 = vmatpush1.msra.mxu0 %v855
        %857 = vmatprep.subr.mxu0 0.0
        %v858 = vand.u32 %v228, 4294901760
        %859 = vmatpush1.msra.mxu0 %v858
        %860 = vmatprep.subr.mxu0 0.0
        %v861 = vand.u32 %v229, 4294901760
        %862 = vmatpush1.msra.mxu0 %v861
        %863 = vmatprep.subr.mxu0 0.0
        %v864 = vand.u32 %v230, 4294901760
        %865 = vmatpush1.msra.mxu0 %v864
        %866 = vmatprep.subr.mxu0 0.0
        %v867 = vand.u32 %v231, 4294901760
        %868 = vmatpush1.msra.mxu0 %v867
        %869 = vmatprep.subr.mxu0 0.0
        %v870 = vand.u32 %v232, 4294901760
        %871 = vmatpush1.msra.mxu0 %v870
        %872 = vmatprep.subr.mxu0 0.0
        %v873 = vand.u32 %v233, 4294901760
        %874 = vmatpush1.msra.mxu0 %v873
        %875 = vmatprep.subr.mxu0 0.0
        %876 = vmatpush1.msra.mxu0 0.0
        %877 = vmatprep.subr.mxu0 0.0
        %878 = vmatpush1.msra.mxu0 0.0
        %879 = vmatprep.subr.mxu0 0.0
        %880 = vmatpush1.msra.mxu0 0.0
        %881 = vmatprep.subr.mxu0 0.0
        %882 = vmatpush1.msra.mxu0 0.0
        %883 = vmatprep.subr.mxu0 0.0
        %884 = vmatpush1.msra.mxu0 0.0
        %885 = vmatprep.subr.mxu0 0.0
        %886 = vmatpush1.msra.mxu0 0.0
        %887 = vmatprep.subr.mxu0 0.0
        %888 = vmatpush1.msra.mxu0 0.0
        %889 = vmatprep.subr.mxu0 0.0
        %890 = vmatpush1.msra.mxu0 0.0
        %891 = vmatprep.subr.mxu0 0.0
        %892 = vmatpush1.msra.mxu0 0.0
        %893 = vmatprep.subr.mxu0 0.0
        %894 = vmatpush1.msra.mxu0 0.0
        %895 = vmatprep.subr.mxu0 0.0
        %896 = vmatpush1.msra.mxu0 0.0
        %897 = vmatprep.subr.mxu0 0.0
        %898 = vmatpush1.msra.mxu0 0.0
        %899 = vmatprep.subr.mxu0 0.0
        %900 = vmatpush1.msra.mxu0 0.0
        %901 = vmatprep.subr.mxu0 0.0
        %902 = vmatpush1.msra.mxu0 0.0
        %903 = vmatprep.subr.mxu0 0.0
        %904 = vmatpush1.msra.mxu0 0.0
        %905 = vmatprep.subr.mxu0 0.0
        %906 = vmatpush1.msra.mxu0 0.0
        %907 = vmatprep.mubr.f32.mxu0 0.0
        %v908 = vand.u32 %v234, 4294901760
        %909 = vmatmul.mubr.f32.gmra.mrb[0].mxu0 %v908
        %v910 = vpop.f32.mrb[0].mxu0
        %v911 = vadd.f32 %v818, %v910
        %v912 = vpop.f32.mrb[0].mxu0
        %913 = vmatprep.mubr.f32.mxu0 0.0
        %v914 = vand.u32 %v235, 4294901760
        %915 = vmatmul.mubr.f32.gmra.mrb[0].mxu0 %v914
        %v916 = vpop.f32.mrb[0].mxu0
        %v917 = vadd.f32 %v824, %v916
        %v918 = vpop.f32.mrb[0].mxu0
        %919 = vdwg.mxu0
        %vm920 = vcmask 130048
        %v922 = vsel %vm920, %v216, 0
        %v925 = vsel %vm920, %v217, 0
        %927 = vmatprep.subr.mxu0 0.0
        %v928 = vand.u32 %v911, 4294901760
        %929 = vmatpush1.msra.mxu0 %v928
        %930 = vmatprep.subr.mxu0 0.0
        %v931 = vand.u32 %v917, 4294901760
        %932 = vmatpush1.msra.mxu0 %v931
        %933 = vmatprep.subr.mxu0 0.0
        %934 = vmatpush1.msra.mxu0 0.0
        %935 = vmatprep.subr.mxu0 0.0
        %936 = vmatpush1.msra.mxu0 0.0
        %937 = vmatprep.subr.mxu0 0.0
        %938 = vmatpush1.msra.mxu0 0.0
        %939 = vmatprep.subr.mxu0 0.0
        %940 = vmatpush1.msra.mxu0 0.0
        %941 = vmatprep.subr.mxu0 0.0
        %942 = vmatpush1.msra.mxu0 0.0
        %943 = vmatprep.subr.mxu0 0.0
        %944 = vmatpush1.msra.mxu0 0.0
        %945 = vmatprep.subr.mxu0 0.0
        %946 = vmatpush1.msra.mxu0 0.0
        %947 = vmatprep.subr.mxu0 0.0
        %948 = vmatpush1.msra.mxu0 0.0
        %949 = vmatprep.subr.mxu0 0.0
        %950 = vmatpush1.msra.mxu0 0.0
        %951 = vmatprep.subr.mxu0 0.0
        %952 = vmatpush1.msra.mxu0 0.0
        %953 = vmatprep.subr.mxu0 0.0
        %954 = vmatpush1.msra.mxu0 0.0
        %955 = vmatprep.subr.mxu0 0.0
        %956 = vmatpush1.msra.mxu0 0.0
        %957 = vmatprep.subr.mxu0 0.0
        %958 = vmatpush1.msra.mxu0 0.0
        %959 = vmatprep.subr.mxu0 0.0
        %960 = vmatpush1.msra.mxu0 0.0
        %961 = vmatprep.subr.mxu0 0.0
        %962 = vmatpush1.msra.mxu0 0.0
        %963 = vmatprep.subr.mxu0 0.0
        %964 = vmatpush1.msra.mxu0 0.0
        %965 = vmatprep.subr.mxu0 0.0
        %966 = vmatpush1.msra.mxu0 0.0
        %967 = vmatprep.subr.mxu0 0.0
        %968 = vmatpush1.msra.mxu0 0.0
        %969 = vmatprep.subr.mxu0 0.0
        %970 = vmatpush1.msra.mxu0 0.0
        %971 = vmatprep.subr.mxu0 0.0
        %972 = vmatpush1.msra.mxu0 0.0
        %973 = vmatprep.subr.mxu0 0.0
        %974 = vmatpush1.msra.mxu0 0.0
        %975 = vmatprep.subr.mxu0 0.0
        %976 = vmatpush1.msra.mxu0 0.0
        %977 = vmatprep.subr.mxu0 0.0
        %978 = vmatpush1.msra.mxu0 0.0
        %979 = vmatprep.subr.mxu0 0.0
        %980 = vmatpush1.msra.mxu0 0.0
        %981 = vmatprep.subr.mxu0 0.0
        %982 = vmatpush1.msra.mxu0 0.0
        %983 = vmatprep.subr.mxu0 0.0
        %984 = vmatpush1.msra.mxu0 0.0
        %985 = vmatprep.subr.mxu0 0.0
        %986 = vmatpush1.msra.mxu0 0.0
        %987 = vmatprep.subr.mxu0 0.0
        %988 = vmatpush1.msra.mxu0 0.0
        %989 = vmatprep.subr.mxu0 0.0
        %990 = vmatpush1.msra.mxu0 0.0
        %991 = vmatprep.subr.mxu0 0.0
        %992 = vmatpush1.msra.mxu0 0.0
        %993 = vmatprep.mubr.f32.mxu0 0.0
        %v994 = vand.u32 %v922, 4294901760
        %v995 = vsub.f32 %v922, %v994
        %v996 = vand.u32 %v995, 4294901760
        %v997 = vsub.f32 %v995, %v996
        %v998 = vand.u32 %v997, 4294901760
        %999 = vmatmul.mubr.f32.gmra.mrb[0].mxu0 %v998
        %v1000 = vpop.f32.mrb[0].mxu0
        %v1001 = vadd.f32 0.0, %v1000
        %v1002 = vpop.f32.mrb[0].mxu0
        %1003 = vmatprep.mubr.f32.mxu0 0.0
        %v1004 = vand.u32 %v925, 4294901760
        %v1005 = vsub.f32 %v925, %v1004
        %v1006 = vand.u32 %v1005, 4294901760
        %v1007 = vsub.f32 %v1005, %v1006
        %v1008 = vand.u32 %v1007, 4294901760
        %1009 = vmatmul.mubr.f32.gmra.mrb[0].mxu0 %v1008
        %v1010 = vpop.f32.mrb[0].mxu0
        %v1011 = vadd.f32 0.0, %v1010
        %v1012 = vpop.f32.mrb[0].mxu0
        %1013 = vdwg.mxu0
        %1014 = vmatprep.subr.mxu0 0.0
        %v1015 = vand.u32 %v911, 4294901760
        %v1016 = vsub.f32 %v911, %v1015
        %v1017 = vand.u32 %v1016, 4294901760
        %v1018 = vsub.f32 %v1016, %v1017
        %v1019 = vand.u32 %v1018, 4294901760
        %1020 = vmatpush1.msra.mxu0 %v1019
        %1021 = vmatprep.subr.mxu0 0.0
        %v1022 = vand.u32 %v917, 4294901760
        %v1023 = vsub.f32 %v917, %v1022
        %v1024 = vand.u32 %v1023, 4294901760
        %v1025 = vsub.f32 %v1023, %v1024
        %v1026 = vand.u32 %v1025, 4294901760
        %1027 = vmatpush1.msra.mxu0 %v1026
        %1028 = vmatprep.subr.mxu0 0.0
        %1029 = vmatpush1.msra.mxu0 0.0
        %1030 = vmatprep.subr.mxu0 0.0
        %1031 = vmatpush1.msra.mxu0 0.0
        %1032 = vmatprep.subr.mxu0 0.0
        %1033 = vmatpush1.msra.mxu0 0.0
        %1034 = vmatprep.subr.mxu0 0.0
        %1035 = vmatpush1.msra.mxu0 0.0
        %1036 = vmatprep.subr.mxu0 0.0
        %1037 = vmatpush1.msra.mxu0 0.0
        %1038 = vmatprep.subr.mxu0 0.0
        %1039 = vmatpush1.msra.mxu0 0.0
        %1040 = vmatprep.subr.mxu0 0.0
        %1041 = vmatpush1.msra.mxu0 0.0
        %1042 = vmatprep.subr.mxu0 0.0
        %1043 = vmatpush1.msra.mxu0 0.0
        %1044 = vmatprep.subr.mxu0 0.0
        %1045 = vmatpush1.msra.mxu0 0.0
        %1046 = vmatprep.subr.mxu0 0.0
        %1047 = vmatpush1.msra.mxu0 0.0
        %1048 = vmatprep.subr.mxu0 0.0
        %1049 = vmatpush1.msra.mxu0 0.0
        %1050 = vmatprep.subr.mxu0 0.0
        %1051 = vmatpush1.msra.mxu0 0.0
        %1052 = vmatprep.subr.mxu0 0.0
        %1053 = vmatpush1.msra.mxu0 0.0
        %1054 = vmatprep.subr.mxu0 0.0
        %1055 = vmatpush1.msra.mxu0 0.0
        %1056 = vmatprep.subr.mxu0 0.0
        %1057 = vmatpush1.msra.mxu0 0.0
        %1058 = vmatprep.subr.mxu0 0.0
        %1059 = vmatpush1.msra.mxu0 0.0
        %1060 = vmatprep.subr.mxu0 0.0
        %1061 = vmatpush1.msra.mxu0 0.0
        %1062 = vmatprep.subr.mxu0 0.0
        %1063 = vmatpush1.msra.mxu0 0.0
        %1064 = vmatprep.subr.mxu0 0.0
        %1065 = vmatpush1.msra.mxu0 0.0
        %1066 = vmatprep.subr.mxu0 0.0
        %1067 = vmatpush1.msra.mxu0 0.0
        %1068 = vmatprep.subr.mxu0 0.0
        %1069 = vmatpush1.msra.mxu0 0.0
        %1070 = vmatprep.subr.mxu0 0.0
        %1071 = vmatpush1.msra.mxu0 0.0
        %1072 = vmatprep.subr.mxu0 0.0
        %1073 = vmatpush1.msra.mxu0 0.0
        %1074 = vmatprep.subr.mxu0 0.0
        %1075 = vmatpush1.msra.mxu0 0.0
        %1076 = vmatprep.subr.mxu0 0.0
        %1077 = vmatpush1.msra.mxu0 0.0
        %1078 = vmatprep.subr.mxu0 0.0
        %1079 = vmatpush1.msra.mxu0 0.0
        %1080 = vmatprep.subr.mxu0 0.0
        %1081 = vmatpush1.msra.mxu0 0.0
        %1082 = vmatprep.subr.mxu0 0.0
        %1083 = vmatpush1.msra.mxu0 0.0
        %1084 = vmatprep.subr.mxu0 0.0
        %1085 = vmatpush1.msra.mxu0 0.0
        %1086 = vmatprep.subr.mxu0 0.0
        %1087 = vmatpush1.msra.mxu0 0.0
        %1088 = vmatprep.mubr.f32.mxu0 0.0
        %v1089 = vand.u32 %v922, 4294901760
        %1090 = vmatmul.mubr.f32.gmra.mrb[0].mxu0 %v1089
        %v1091 = vpop.f32.mrb[0].mxu0
        %v1092 = vadd.f32 %v1001, %v1091
        %v1093 = vpop.f32.mrb[0].mxu0
        %1094 = vmatprep.mubr.f32.mxu0 0.0
        %v1095 = vand.u32 %v925, 4294901760
        %1096 = vmatmul.mubr.f32.gmra.mrb[0].mxu0 %v1095
        %v1097 = vpop.f32.mrb[0].mxu0
        %v1098 = vadd.f32 %v1011, %v1097
        %v1099 = vpop.f32.mrb[0].mxu0
        %1100 = vdwg.mxu0
        %1101 = vmatprep.subr.mxu0 0.0
        %v1102 = vand.u32 %v911, 4294901760
        %v1103 = vsub.f32 %v911, %v1102
        %1104 = vmatpush1.msra.mxu0 %v1103
        %1105 = vmatprep.subr.mxu0 0.0
        %v1106 = vand.u32 %v917, 4294901760
        %v1107 = vsub.f32 %v917, %v1106
        %1108 = vmatpush1.msra.mxu0 %v1107
        %1109 = vmatprep.subr.mxu0 0.0
        %1110 = vmatpush1.msra.mxu0 0.0
        %1111 = vmatprep.subr.mxu0 0.0
        %1112 = vmatpush1.msra.mxu0 0.0
        %1113 = vmatprep.subr.mxu0 0.0
        %1114 = vmatpush1.msra.mxu0 0.0
        %1115 = vmatprep.subr.mxu0 0.0
        %1116 = vmatpush1.msra.mxu0 0.0
        %1117 = vmatprep.subr.mxu0 0.0
        %1118 = vmatpush1.msra.mxu0 0.0
        %1119 = vmatprep.subr.mxu0 0.0
        %1120 = vmatpush1.msra.mxu0 0.0
        %1121 = vmatprep.subr.mxu0 0.0
        %1122 = vmatpush1.msra.mxu0 0.0
        %1123 = vmatprep.subr.mxu0 0.0
        %1124 = vmatpush1.msra.mxu0 0.0
        %1125 = vmatprep.subr.mxu0 0.0
        %1126 = vmatpush1.msra.mxu0 0.0
        %1127 = vmatprep.subr.mxu0 0.0
        %1128 = vmatpush1.msra.mxu0 0.0
        %1129 = vmatprep.subr.mxu0 0.0
        %1130 = vmatpush1.msra.mxu0 0.0
        %1131 = vmatprep.subr.mxu0 0.0
        %1132 = vmatpush1.msra.mxu0 0.0
        %1133 = vmatprep.subr.mxu0 0.0
        %1134 = vmatpush1.msra.mxu0 0.0
        %1135 = vmatprep.subr.mxu0 0.0
        %1136 = vmatpush1.msra.mxu0 0.0
        %1137 = vmatprep.subr.mxu0 0.0
        %1138 = vmatpush1.msra.mxu0 0.0
        %1139 = vmatprep.subr.mxu0 0.0
        %1140 = vmatpush1.msra.mxu0 0.0
        %1141 = vmatprep.subr.mxu0 0.0
        %1142 = vmatpush1.msra.mxu0 0.0
        %1143 = vmatprep.subr.mxu0 0.0
        %1144 = vmatpush1.msra.mxu0 0.0
        %1145 = vmatprep.subr.mxu0 0.0
        %1146 = vmatpush1.msra.mxu0 0.0
        %1147 = vmatprep.subr.mxu0 0.0
        %1148 = vmatpush1.msra.mxu0 0.0
        %1149 = vmatprep.subr.mxu0 0.0
        %1150 = vmatpush1.msra.mxu0 0.0
        %1151 = vmatprep.subr.mxu0 0.0
        %1152 = vmatpush1.msra.mxu0 0.0
        %1153 = vmatprep.subr.mxu0 0.0
        %1154 = vmatpush1.msra.mxu0 0.0
        %1155 = vmatprep.subr.mxu0 0.0
        %1156 = vmatpush1.msra.mxu0 0.0
        %1157 = vmatprep.subr.mxu0 0.0
        %1158 = vmatpush1.msra.mxu0 0.0
        %1159 = vmatprep.subr.mxu0 0.0
        %1160 = vmatpush1.msra.mxu0 0.0
        %1161 = vmatprep.subr.mxu0 0.0
        %1162 = vmatpush1.msra.mxu0 0.0
        %1163 = vmatprep.subr.mxu0 0.0
        %1164 = vmatpush1.msra.mxu0 0.0
        %1165 = vmatprep.subr.mxu0 0.0
        %1166 = vmatpush1.msra.mxu0 0.0
        %1167 = vmatprep.subr.mxu0 0.0
        %1168 = vmatpush1.msra.mxu0 0.0
        %1169 = vmatprep.mubr.f32.mxu0 0.0
        %v1170 = vand.u32 %v922, 4294901760
        %v1171 = vsub.f32 %v922, %v1170
        %1172 = vmatmul.mubr.f32.gmra.mrb[0].mxu0 %v1171
        %v1173 = vpop.f32.mrb[0].mxu0
        %v1174 = vadd.f32 %v1092, %v1173
        %v1175 = vpop.f32.mrb[0].mxu0
        %1176 = vmatprep.mubr.f32.mxu0 0.0
        %v1177 = vand.u32 %v925, 4294901760
        %v1178 = vsub.f32 %v925, %v1177
        %1179 = vmatmul.mubr.f32.gmra.mrb[0].mxu0 %v1178
        %v1180 = vpop.f32.mrb[0].mxu0
        %v1181 = vadd.f32 %v1098, %v1180
        %v1182 = vpop.f32.mrb[0].mxu0
        %1183 = vdwg.mxu0
        %1184 = vmatprep.subr.mxu0 0.0
        %v1185 = vand.u32 %v911, 4294901760
        %1186 = vmatpush1.msra.mxu0 %v1185
        %1187 = vmatprep.subr.mxu0 0.0
        %v1188 = vand.u32 %v917, 4294901760
        %1189 = vmatpush1.msra.mxu0 %v1188
        %1190 = vmatprep.subr.mxu0 0.0
        %1191 = vmatpush1.msra.mxu0 0.0
        %1192 = vmatprep.subr.mxu0 0.0
        %1193 = vmatpush1.msra.mxu0 0.0
        %1194 = vmatprep.subr.mxu0 0.0
        %1195 = vmatpush1.msra.mxu0 0.0
        %1196 = vmatprep.subr.mxu0 0.0
        %1197 = vmatpush1.msra.mxu0 0.0
        %1198 = vmatprep.subr.mxu0 0.0
        %1199 = vmatpush1.msra.mxu0 0.0
        %1200 = vmatprep.subr.mxu0 0.0
        %1201 = vmatpush1.msra.mxu0 0.0
        %1202 = vmatprep.subr.mxu0 0.0
        %1203 = vmatpush1.msra.mxu0 0.0
        %1204 = vmatprep.subr.mxu0 0.0
        %1205 = vmatpush1.msra.mxu0 0.0
        %1206 = vmatprep.subr.mxu0 0.0
        %1207 = vmatpush1.msra.mxu0 0.0
        %1208 = vmatprep.subr.mxu0 0.0
        %1209 = vmatpush1.msra.mxu0 0.0
        %1210 = vmatprep.subr.mxu0 0.0
        %1211 = vmatpush1.msra.mxu0 0.0
        %1212 = vmatprep.subr.mxu0 0.0
        %1213 = vmatpush1.msra.mxu0 0.0
        %1214 = vmatprep.subr.mxu0 0.0
        %1215 = vmatpush1.msra.mxu0 0.0
        %1216 = vmatprep.subr.mxu0 0.0
        %1217 = vmatpush1.msra.mxu0 0.0
        %1218 = vmatprep.subr.mxu0 0.0
        %1219 = vmatpush1.msra.mxu0 0.0
        %1220 = vmatprep.subr.mxu0 0.0
        %1221 = vmatpush1.msra.mxu0 0.0
        %1222 = vmatprep.subr.mxu0 0.0
        %1223 = vmatpush1.msra.mxu0 0.0
        %1224 = vmatprep.subr.mxu0 0.0
        %1225 = vmatpush1.msra.mxu0 0.0
        %1226 = vmatprep.subr.mxu0 0.0
        %1227 = vmatpush1.msra.mxu0 0.0
        %1228 = vmatprep.subr.mxu0 0.0
        %1229 = vmatpush1.msra.mxu0 0.0
        %1230 = vmatprep.subr.mxu0 0.0
        %1231 = vmatpush1.msra.mxu0 0.0
        %1232 = vmatprep.subr.mxu0 0.0
        %1233 = vmatpush1.msra.mxu0 0.0
        %1234 = vmatprep.subr.mxu0 0.0
        %1235 = vmatpush1.msra.mxu0 0.0
        %1236 = vmatprep.subr.mxu0 0.0
        %1237 = vmatpush1.msra.mxu0 0.0
        %1238 = vmatprep.subr.mxu0 0.0
        %1239 = vmatpush1.msra.mxu0 0.0
        %1240 = vmatprep.subr.mxu0 0.0
        %1241 = vmatpush1.msra.mxu0 0.0
        %1242 = vmatprep.subr.mxu0 0.0
        %1243 = vmatpush1.msra.mxu0 0.0
        %1244 = vmatprep.subr.mxu0 0.0
        %1245 = vmatpush1.msra.mxu0 0.0
        %1246 = vmatprep.subr.mxu0 0.0
        %1247 = vmatpush1.msra.mxu0 0.0
        %1248 = vmatprep.subr.mxu0 0.0
        %1249 = vmatpush1.msra.mxu0 0.0
        %1250 = vmatprep.mubr.f32.mxu0 0.0
        %v1251 = vand.u32 %v922, 4294901760
        %v1252 = vsub.f32 %v922, %v1251
        %v1253 = vand.u32 %v1252, 4294901760
        %1254 = vmatmul.mubr.f32.gmra.mrb[0].mxu0 %v1253
        %v1255 = vpop.f32.mrb[0].mxu0
        %v1256 = vadd.f32 %v1174, %v1255
        %v1257 = vpop.f32.mrb[0].mxu0
        %1258 = vmatprep.mubr.f32.mxu0 0.0
        %v1259 = vand.u32 %v925, 4294901760
        %v1260 = vsub.f32 %v925, %v1259
        %v1261 = vand.u32 %v1260, 4294901760
        %1262 = vmatmul.mubr.f32.gmra.mrb[0].mxu0 %v1261
        %v1263 = vpop.f32.mrb[0].mxu0
        %v1264 = vadd.f32 %v1181, %v1263
        %v1265 = vpop.f32.mrb[0].mxu0
        %1266 = vdwg.mxu0
        %1267 = vmatprep.subr.mxu0 0.0
        %v1268 = vand.u32 %v911, 4294901760
        %v1269 = vsub.f32 %v911, %v1268
        %v1270 = vand.u32 %v1269, 4294901760
        %1271 = vmatpush1.msra.mxu0 %v1270
        %1272 = vmatprep.subr.mxu0 0.0
        %v1273 = vand.u32 %v917, 4294901760
        %v1274 = vsub.f32 %v917, %v1273
        %v1275 = vand.u32 %v1274, 4294901760
        %1276 = vmatpush1.msra.mxu0 %v1275
        %1277 = vmatprep.subr.mxu0 0.0
        %1278 = vmatpush1.msra.mxu0 0.0
        %1279 = vmatprep.subr.mxu0 0.0
        %1280 = vmatpush1.msra.mxu0 0.0
        %1281 = vmatprep.subr.mxu0 0.0
        %1282 = vmatpush1.msra.mxu0 0.0
        %1283 = vmatprep.subr.mxu0 0.0
        %1284 = vmatpush1.msra.mxu0 0.0
        %1285 = vmatprep.subr.mxu0 0.0
        %1286 = vmatpush1.msra.mxu0 0.0
        %1287 = vmatprep.subr.mxu0 0.0
        %1288 = vmatpush1.msra.mxu0 0.0
        %1289 = vmatprep.subr.mxu0 0.0
        %1290 = vmatpush1.msra.mxu0 0.0
        %1291 = vmatprep.subr.mxu0 0.0
        %1292 = vmatpush1.msra.mxu0 0.0
        %1293 = vmatprep.subr.mxu0 0.0
        %1294 = vmatpush1.msra.mxu0 0.0
        %1295 = vmatprep.subr.mxu0 0.0
        %1296 = vmatpush1.msra.mxu0 0.0
        %1297 = vmatprep.subr.mxu0 0.0
        %1298 = vmatpush1.msra.mxu0 0.0
        %1299 = vmatprep.subr.mxu0 0.0
        %1300 = vmatpush1.msra.mxu0 0.0
        %1301 = vmatprep.subr.mxu0 0.0
        %1302 = vmatpush1.msra.mxu0 0.0
        %1303 = vmatprep.subr.mxu0 0.0
        %1304 = vmatpush1.msra.mxu0 0.0
        %1305 = vmatprep.subr.mxu0 0.0
        %1306 = vmatpush1.msra.mxu0 0.0
        %1307 = vmatprep.subr.mxu0 0.0
        %1308 = vmatpush1.msra.mxu0 0.0
        %1309 = vmatprep.subr.mxu0 0.0
        %1310 = vmatpush1.msra.mxu0 0.0
        %1311 = vmatprep.subr.mxu0 0.0
        %1312 = vmatpush1.msra.mxu0 0.0
        %1313 = vmatprep.subr.mxu0 0.0
        %1314 = vmatpush1.msra.mxu0 0.0
        %1315 = vmatprep.subr.mxu0 0.0
        %1316 = vmatpush1.msra.mxu0 0.0
        %1317 = vmatprep.subr.mxu0 0.0
        %1318 = vmatpush1.msra.mxu0 0.0
        %1319 = vmatprep.subr.mxu0 0.0
        %1320 = vmatpush1.msra.mxu0 0.0
        %1321 = vmatprep.subr.mxu0 0.0
        %1322 = vmatpush1.msra.mxu0 0.0
        %1323 = vmatprep.subr.mxu0 0.0
        %1324 = vmatpush1.msra.mxu0 0.0
        %1325 = vmatprep.subr.mxu0 0.0
        %1326 = vmatpush1.msra.mxu0 0.0
        %1327 = vmatprep.subr.mxu0 0.0
        %1328 = vmatpush1.msra.mxu0 0.0
        %1329 = vmatprep.subr.mxu0 0.0
        %1330 = vmatpush1.msra.mxu0 0.0
        %1331 = vmatprep.subr.mxu0 0.0
        %1332 = vmatpush1.msra.mxu0 0.0
        %1333 = vmatprep.subr.mxu0 0.0
        %1334 = vmatpush1.msra.mxu0 0.0
        %1335 = vmatprep.subr.mxu0 0.0
        %1336 = vmatpush1.msra.mxu0 0.0
        %1337 = vmatprep.mubr.f32.mxu0 0.0
        %v1338 = vand.u32 %v922, 4294901760
        %1339 = vmatmul.mubr.f32.gmra.mrb[0].mxu0 %v1338
        %v1340 = vpop.f32.mrb[0].mxu0
        %v1341 = vadd.f32 %v1256, %v1340
        %v1342 = vpop.f32.mrb[0].mxu0
        %1343 = vmatprep.mubr.f32.mxu0 0.0
        %v1344 = vand.u32 %v925, 4294901760
        %1345 = vmatmul.mubr.f32.gmra.mrb[0].mxu0 %v1344
        %v1346 = vpop.f32.mrb[0].mxu0
        %v1347 = vadd.f32 %v1264, %v1346
        %v1348 = vpop.f32.mrb[0].mxu0
        %1349 = vdwg.mxu0
        %1350 = vmatprep.subr.mxu0 0.0
        %v1351 = vand.u32 %v911, 4294901760
        %1352 = vmatpush1.msra.mxu0 %v1351
        %1353 = vmatprep.subr.mxu0 0.0
        %v1354 = vand.u32 %v917, 4294901760
        %1355 = vmatpush1.msra.mxu0 %v1354
        %1356 = vmatprep.subr.mxu0 0.0
        %1357 = vmatpush1.msra.mxu0 0.0
        %1358 = vmatprep.subr.mxu0 0.0
        %1359 = vmatpush1.msra.mxu0 0.0
        %1360 = vmatprep.subr.mxu0 0.0
        %1361 = vmatpush1.msra.mxu0 0.0
        %1362 = vmatprep.subr.mxu0 0.0
        %1363 = vmatpush1.msra.mxu0 0.0
        %1364 = vmatprep.subr.mxu0 0.0
        %1365 = vmatpush1.msra.mxu0 0.0
        %1366 = vmatprep.subr.mxu0 0.0
        %1367 = vmatpush1.msra.mxu0 0.0
        %1368 = vmatprep.subr.mxu0 0.0
        %1369 = vmatpush1.msra.mxu0 0.0
        %1370 = vmatprep.subr.mxu0 0.0
        %1371 = vmatpush1.msra.mxu0 0.0
        %1372 = vmatprep.subr.mxu0 0.0
        %1373 = vmatpush1.msra.mxu0 0.0
        %1374 = vmatprep.subr.mxu0 0.0
        %1375 = vmatpush1.msra.mxu0 0.0
        %1376 = vmatprep.subr.mxu0 0.0
        %1377 = vmatpush1.msra.mxu0 0.0
        %1378 = vmatprep.subr.mxu0 0.0
        %1379 = vmatpush1.msra.mxu0 0.0
        %1380 = vmatprep.subr.mxu0 0.0
        %1381 = vmatpush1.msra.mxu0 0.0
        %1382 = vmatprep.subr.mxu0 0.0
        %1383 = vmatpush1.msra.mxu0 0.0
        %1384 = vmatprep.subr.mxu0 0.0
        %1385 = vmatpush1.msra.mxu0 0.0
        %1386 = vmatprep.subr.mxu0 0.0
        %1387 = vmatpush1.msra.mxu0 0.0
        %1388 = vmatprep.subr.mxu0 0.0
        %1389 = vmatpush1.msra.mxu0 0.0
        %1390 = vmatprep.subr.mxu0 0.0
        %1391 = vmatpush1.msra.mxu0 0.0
        %1392 = vmatprep.subr.mxu0 0.0
        %1393 = vmatpush1.msra.mxu0 0.0
        %1394 = vmatprep.subr.mxu0 0.0
        %1395 = vmatpush1.msra.mxu0 0.0
        %1396 = vmatprep.subr.mxu0 0.0
        %1397 = vmatpush1.msra.mxu0 0.0
        %1398 = vmatprep.subr.mxu0 0.0
        %1399 = vmatpush1.msra.mxu0 0.0
        %1400 = vmatprep.subr.mxu0 0.0
        %1401 = vmatpush1.msra.mxu0 0.0
        %1402 = vmatprep.subr.mxu0 0.0
        %1403 = vmatpush1.msra.mxu0 0.0
        %1404 = vmatprep.subr.mxu0 0.0
        %1405 = vmatpush1.msra.mxu0 0.0
        %1406 = vmatprep.subr.mxu0 0.0
        %1407 = vmatpush1.msra.mxu0 0.0
        %1408 = vmatprep.subr.mxu0 0.0
        %1409 = vmatpush1.msra.mxu0 0.0
        %1410 = vmatprep.subr.mxu0 0.0
        %1411 = vmatpush1.msra.mxu0 0.0
        %1412 = vmatprep.subr.mxu0 0.0
        %1413 = vmatpush1.msra.mxu0 0.0
        %1414 = vmatprep.subr.mxu0 0.0
        %1415 = vmatpush1.msra.mxu0 0.0
        %1416 = vmatprep.mubr.f32.mxu0 0.0
        %v1417 = vand.u32 %v922, 4294901760
        %1418 = vmatmul.mubr.f32.gmra.mrb[0].mxu0 %v1417
        %v1419 = vpop.f32.mrb[0].mxu0
        %v1420 = vadd.f32 %v1341, %v1419
        %v1421 = vpop.f32.mrb[0].mxu0
        %1422 = vmatprep.mubr.f32.mxu0 0.0
        %v1423 = vand.u32 %v925, 4294901760
        %1424 = vmatmul.mubr.f32.gmra.mrb[0].mxu0 %v1423
        %v1425 = vpop.f32.mrb[0].mxu0
        %v1426 = vadd.f32 %v1347, %v1425
        %v1427 = vpop.f32.mrb[0].mxu0
        %1428 = vdwg.mxu0
        %v1429 = vsub.f32 %v234, %v1420
        %v1430 = vsub.f32 %v235, %v1426
        %v1431 = vmul.f32 %v1429, 4.0
        %v1432 = vmul.f32 %v1430, 4.0
        %v1433 = vmax.f32 %v1431, -1.0
        %v1434 = vmax.f32 %v1432, -1.0
        %v1435 = vmin.f32 %v1433, 1.0
        %v1436 = vmin.f32 %v1434, 1.0
        %1437 = vst [vmem:[%s215] sm:$0xff] %v1435
        %1438 = vst [vmem:[%s215 + $0x8] sm:$0xff] %v1436
        %s1439 = sand.u32 %s95, 1
        %s1440 = scalar_lea.sflag [#allocation4], %s1439
        %s1441 = sand.u32 %s95, 1
        %s1442 = smul.addr %s1441, 16
        %s1443 = scalar_lea.vmem [#allocation8], %s1442
        // Predicated region
        $region45: #{tpu_custom_call.1} parent=31 // pred_check
          %p1444 = pneg %p105
        $region46: #{tpu_custom_call.1} parent=31 // pred_check_branch
          %1446 = sbr.rel (%p1444) target = $region48
        $region47: #{tpu_custom_call.1} parent=31 // pred_region
          %s1448 = ssub.s32 256, 256
          %1449 = vsyncadd %s1440, %s1448
          %s1450 = smul.addr %s19, 2
          %s1451 = smul.addr %s1450, 128
          %s1452 = scalar_lea.hbm %s3, %s1451
          %s1453 = sshll.u32 %s1443, 4
          %s1454 = int_to_ptr.vmem [resolvable:$true] %s1453
          %1459 = dma.vmem_to_hbm [thread:$0]  %s1454, 256, %s1452, %s1440, 128, 128, 8
        $region48: #{tpu_custom_call.1} parent=31 // pred_fallthru
          _
      $region32: #{tpu_custom_call.1} parent=5 // pred_fallthru
        _
      %p1460 = scmp.le.s32.totalorder 2, %s14
      // Predicated region
      $region49: #{tpu_custom_call.1} parent=5 // pred_check
        %p1461 = pneg %p1460
      $region50: #{tpu_custom_call.1} parent=5 // pred_check_branch
        %1463 = sbr.rel (%p1461) target = $region52
      $region51: #{tpu_custom_call.1} parent=5 // pred_region
        %s1464 = ssub.s32 %s14, 2
        // Predicated region
        $region53: #{tpu_custom_call.1} parent=51 // pred_check
          %p1465 = pneg %p111
        $region54: #{tpu_custom_call.1} parent=51 // pred_check_branch
          %1467 = sbr.rel (%p1465) target = $region56
        $region55: #{tpu_custom_call.1} parent=51 // pred_region
          %s1468 = sand.u32 %s96, 1
          %s1469 = scalar_lea.sflag [#allocation4], %s1468
          %s1470 = sand.u32 %s96, 1
          %s1471 = smul.addr %s1470, 16
          %s1472 = scalar_lea.vmem [#allocation8], %s1471
          %1473 = dma.done %s1469, 256
        $region56: #{tpu_custom_call.1} parent=51 // pred_fallthru
          _
      $region52: #{tpu_custom_call.1} parent=5 // pred_fallthru
        _
    $region6: #{tpu_custom_call.1} parent=1 // loop_footer
      %s18 = sadd.s32 1, %s14
    $region7: #{tpu_custom_call.1} parent=1 // loop_footer_branch
      %13 = sbr.rel target = $region3
    $region8: #{tpu_custom_call.1} parent=1 // loop_exit
      _
    %1474 = vsyncpa [#allocation3], 1
    %s1475 = scalar_lea.sflag [#allocation3], 1
    %1476 = vsyncpa %s1475, 1
    %1477 = vsyncpa [#allocation6], 1
    %1478 = vsyncpa [#allocation4], 1
    %s1479 = scalar_lea.sflag [#allocation4], 1
    %1480 = vsyncpa %s1479, 1

</llo_original>
